<compile_context>
chip_gen: v5e
topology: v5e:2x2
jax: 0.10.0
libtpu: 0.0.40
codegen_flags: <defaults>
</compile_context>

<pallas_src>
import jax
import jax.numpy as jnp
from jax.experimental import pallas as pl
from jax.experimental.pallas import tpu as pltpu


def _round_up(x, m):
    return ((x + m - 1) // m) * m


def _fold_bn(gamma, beta, running_mean, running_var, eps=1e-5):
    scale = gamma / jnp.sqrt(running_var + eps)
    shift = beta - running_mean * scale
    return scale, shift


def _make_tabular_kernel(n_layers):
    """Kernel for n_layers matmuls (hidden Linear+ReLU layers plus the output Linear).

    Ref order: x, (W_0, b_0), ..., (W_{n-1}, b_{n-1}), out.
    All BatchNorms / biases are pre-folded into (W_i, b_i). Hidden layers apply ReLU;
    the last layer feeds a softmax over the (padded, lane-dense) output columns.
    """

    def kernel(x_ref, *refs):
        out_ref = refs[-1]
        h = x_ref[...]                                     # (TILE_B, in_pad) bf16
        for l in range(n_layers):
            w = refs[2 * l][...]                           # (in_pad, out_pad) bf16
            b = refs[2 * l + 1][...]                       # (1, out_pad)      f32
            z = jnp.dot(h, w, preferred_element_type=jnp.float32) + b
            if l < n_layers - 1:
                # Linear + ReLU (+ BatchNorm folded into next layer); dropout = identity (eval)
                h = jnp.maximum(z, 0.0).astype(jnp.bfloat16)
            else:
                # softmax(dim=1); padded columns have bias -1e30 -> exp underflows to 0
                m = jnp.max(z, axis=1, keepdims=True)
                e = jnp.exp(z - m)
                denom = jnp.sum(e, axis=1, keepdims=True)
                out_ref[...] = e * pl.reciprocal(denom, approx=True)

    return kernel


def _prepare_kernel_params(params, no_of_embs, no_of_cont):
    """Fold BN (eval running stats) + biases into the weights, transpose to (in, out),
    zero-pad all matmul dims to multiples of 128, cast matmul operands to bf16."""
    # first_bn_layer acts on the cont columns of the concatenated [emb, cont] input;
    # fold it into the input side of the first Linear (identity over emb columns).
    s0, t0 = _fold_bn(*params["first_bn"])
    scale = jnp.concatenate([jnp.ones((no_of_embs,), jnp.float32), s0])
    shift = jnp.concatenate([jnp.zeros((no_of_embs,), jnp.float32), t0])

    mats = []
    n_lin = len(params["lin_weights"])
    for i in range(n_lin):
        wt = params["lin_weights"][i].T.astype(jnp.float32)   # (in, out)
        b = params["lin_biases"][i].astype(jnp.float32)
        mats.append((wt * scale[:, None], b + shift @ wt))
        # bn_layers[i] (applied after the ReLU) folds into the *next* matmul's input side.
        scale, shift = _fold_bn(*params["bn_layers"][i])
    wt = params["out_weight"].T.astype(jnp.float32)
    b = params["out_bias"].astype(jnp.float32)
    mats.append((wt * scale[:, None], b + shift @ wt))

    padded = []
    for i, (w, b) in enumerate(mats):
        rows, cols = w.shape
        rpad, cpad = _round_up(rows, 128), _round_up(cols, 128)
        w_p = jnp.pad(w, ((0, rpad - rows), (0, cpad - cols))).astype(jnp.bfloat16)
        # padded hidden columns: bias 0 -> relu -> 0, no effect downstream (zero weight rows);
        # padded output columns: bias -1e30 -> softmax weight 0.
        fill = 0.0 if i < len(mats) - 1 else -1e30
        b_p = jnp.pad(b, (0, cpad - cols), constant_values=fill).reshape(1, cpad)
        padded.append((w_p, b_p.astype(jnp.float32)))
    return padded


def _prepare_inputs(cont_data, cat_data, params, tile_b):
    """Embedding gather + concat + feature/batch padding (plain-JAX glue)."""
    B = cont_data.shape[0]
    no_of_embs = sum(t.shape[1] for t in params["emb_tables"])

    embs = [tbl[cat_data[:, i]] for i, tbl in enumerate(params["emb_tables"])]
    # emb_dropout_layer -> identity at inference; first BN folded into layer-0 weights.
    x = jnp.concatenate(embs + [cont_data.astype(jnp.float32)], axis=1)

    mats = _prepare_kernel_params(params, no_of_embs, cont_data.shape[1])
    in_pad = mats[0][0].shape[0]

    tile_b = min(tile_b, _round_up(B, 8))          # sublane multiple of 8
    b_pad = _round_up(B, tile_b)
    x = jnp.pad(x, ((0, b_pad - B), (0, in_pad - x.shape[1]))).astype(jnp.bfloat16)
    return x, mats, tile_b, b_pad


def tabular_nn_forward(cont_data, cat_data, params, *, tile_b=256, interpret=False):
    B = cont_data.shape[0]
    output_size = params["out_weight"].shape[0]

    x, mats, tile_b, b_pad = _prepare_inputs(cont_data, cat_data, params, tile_b)
    in_pad = x.shape[1]
    out_pad = mats[-1][0].shape[1]

    grid = (b_pad // tile_b,)
    in_specs = [pl.BlockSpec((tile_b, in_pad), lambda i: (i, 0))]
    args = [x]
    for w, b in mats:
        # constant index_map -> weight/bias blocks stay VMEM-resident across grid steps
        in_specs.append(pl.BlockSpec(w.shape, lambda i: (0, 0)))
        in_specs.append(pl.BlockSpec(b.shape, lambda i: (0, 0)))
        args += [w, b]
    out_specs = pl.BlockSpec((tile_b, out_pad), lambda i: (i, 0))

    # VMEM budget: resident weights + double-buffered input tile + double-buffered output tile.
    weight_bytes = sum(w.size * w.dtype.itemsize + b.size * 4 for w, b in mats)
    tile_bytes = 2 * (tile_b * in_pad * 2) + 2 * (tile_b * out_pad * 4)
    vmem_limit = int(min(max(4 * (weight_bytes + tile_bytes), 8 << 20), 48 << 20))

    out = pl.pallas_call(
        _make_tabular_kernel(len(mats)),
        out_shape=jax.ShapeDtypeStruct((b_pad, out_pad), jnp.float32),
        grid=grid,
        in_specs=in_specs,
        out_specs=out_specs,
        compiler_params=pltpu.CompilerParams(
            dimension_semantics=("parallel",),
            vmem_limit_bytes=vmem_limit,
        ),
        interpret=interpret,
    )(*args)

    return out[:B, :output_size]


# ----------------------------- references / test ----------------------------------


def _matched_reference(cont_data, cat_data, params, *, tile_b=256):
    """Plain-JAX replica of the exact folded/padded/bf16 math the kernel runs."""
    B = cont_data.shape[0]
    output_size = params["out_weight"].shape[0]
    x, mats, _, _ = _prepare_inputs(cont_data, cat_data, params, tile_b)
    h = x
    out = None
    for i, (w, b) in enumerate(mats):
        z = jnp.dot(h, w, preferred_element_type=jnp.float32) + b
        if i < len(mats) - 1:
            h = jnp.maximum(z, 0.0).astype(jnp.bfloat16)
        else:
            out = jax.nn.softmax(z, axis=1)
    return out[:B, :output_size]


def _reference_forward(cont_data, cat_data, params):
    """Pure-JAX f32 reference with the original eval-mode semantics."""
    embs = [tbl[cat_data[:, i]] for i, tbl in enumerate(params["emb_tables"])]
    x = jnp.concatenate(embs, axis=1)
    s, t = _fold_bn(*params["first_bn"])
    x = jnp.concatenate([x, cont_data * s + t], axis=1)
    for i in range(len(params["lin_weights"])):
        x = jnp.maximum(x @ params["lin_weights"][i].T + params["lin_biases"][i], 0.0)
        s, t = _fold_bn(*params["bn_layers"][i])
        x = x * s + t
    logits = x @ params["out_weight"].T + params["out_bias"]
    return jax.nn.softmax(logits, axis=1)


def _init_params(key, emb_dims, no_of_cont, lin_layer_sizes, output_size):
    """Deterministic synthetic init mirroring the PyTorch module's shapes."""
    params = {}
    n_keys = len(emb_dims) + 4 * (len(lin_layer_sizes) + 1) + 4 + 2 + 8
    keys = iter(jax.random.split(key, n_keys))

    params["emb_tables"] = [
        jax.random.normal(next(keys), (n, d), jnp.float32) for n, d in emb_dims
    ]
    no_of_embs = sum(d for _, d in emb_dims)

    def kaiming_linear(kw, kb, fan_in, fan_out):
        w = jax.random.normal(kw, (fan_out, fan_in), jnp.float32) * jnp.sqrt(2.0 / fan_in)
        bound = 1.0 / jnp.sqrt(float(fan_in))
        b = jax.random.uniform(kb, (fan_out,), jnp.float32, -bound, bound)
        return w, b

    def synthetic_bn(k1, k2, k3, k4, n):
        gamma = jax.random.uniform(k1, (n,), jnp.float32, 0.5, 1.5)
        beta = 0.1 * jax.random.normal(k2, (n,), jnp.float32)
        running_mean = 0.1 * jax.random.normal(k3, (n,), jnp.float32)
        running_var = jax.random.uniform(k4, (n,), jnp.float32, 0.5, 1.5)
        return (gamma, beta, running_mean, running_var)

    params["first_bn"] = synthetic_bn(next(keys), next(keys), next(keys), next(keys),
                                      no_of_cont)

    in_sizes = [no_of_embs + no_of_cont] + lin_layer_sizes[:-1]
    params["lin_weights"], params["lin_biases"], params["bn_layers"] = [], [], []
    for fan_in, fan_out in zip(in_sizes, lin_layer_sizes):
        w, b = kaiming_linear(next(keys), next(keys), fan_in, fan_out)
        params["lin_weights"].append(w)
        params["lin_biases"].append(b)
        params["bn_layers"].append(
            synthetic_bn(next(keys), next(keys), next(keys), next(keys), fan_out))

    w, b = kaiming_linear(next(keys), next(keys), lin_layer_sizes[-1], output_size)
    params["out_weight"], params["out_bias"] = w, b
    return params


if __name__ == "__main__":
    emb_dims = [(10, 4), (12, 4)]          # two categorical features -> 8 emb dims total
    no_of_cont = 8
    lin_layer_sizes = [32, 16]
    output_size = 4
    batch = 8

    key = jax.random.PRNGKey(0)
    k_params, k_cont, k_cat0, k_cat1 = jax.random.split(key, 4)

    params = _init_params(k_params, emb_dims, no_of_cont, lin_layer_sizes, output_size)

    cont_data = jax.random.normal(k_cont, (batch, no_of_cont), jnp.float32)
    cat_data = jnp.stack(
        [jax.random.randint(k_cat0, (batch,), 0, emb_dims[0][0]),
         jax.random.randint(k_cat1, (batch,), 0, emb_dims[1][0])],
        axis=1).astype(jnp.int32)

    out = jax.block_until_ready(tabular_nn_forward(cont_data, cat_data, params))
    assert out.shape == (batch, output_size)

    # Tight check vs a plain-JAX replica of the same folded/bf16 math
    # (only difference: approximate EUP reciprocal in the kernel's softmax).
    matched = _matched_reference(cont_data, cat_data, params)
    assert jnp.allclose(out, matched, atol=3e-3), (out, matched)

    # Semantics check vs the f32 eval-mode reference (bf16 matmuls => loose tolerance).
    ref = _reference_forward(cont_data, cat_data, params)
    assert jnp.allclose(out, ref, atol=5e-2), (out, ref)

    # Softmax rows sum to 1 (up to approx-reciprocal error).
    assert jnp.allclose(jnp.sum(out, axis=1), jnp.ones((batch,)), atol=5e-3)

    print("KERNEL_OK")
</pallas_src>

<mosaic_0001>
module attributes {stable_mosaic.version = 11 : i64} {
  func.func @kernel(%arg0: i32, %arg1: memref<8x128xbf16, #tpu.memory_space<vmem>>, %arg2: memref<128x128xbf16, #tpu.memory_space<vmem>>, %arg3: memref<1x128xf32, #tpu.memory_space<vmem>>, %arg4: memref<128x128xbf16, #tpu.memory_space<vmem>>, %arg5: memref<1x128xf32, #tpu.memory_space<vmem>>, %arg6: memref<128x128xbf16, #tpu.memory_space<vmem>>, %arg7: memref<1x128xf32, #tpu.memory_space<vmem>>, %arg8: memref<8x128xf32, #tpu.memory_space<vmem>>) attributes {dimension_semantics = [#tpu.dimension_semantics<parallel>], iteration_bounds = array<i64: 1>, scalar_prefetch = 0 : i64, scratch_operands = 0 : i64, tpu.core_type = #tpu.core_type<tc>, window_params = [{transform_indices = @transform_0, window_bounds = array<i64: 8, 128>}, {pipeline_mode = #tpu.pipeline_mode<synchronous>, transform_indices = @transform_1, window_bounds = array<i64: 128, 128>}, {pipeline_mode = #tpu.pipeline_mode<synchronous>, transform_indices = @transform_2, window_bounds = array<i64: 1, 128>}, {pipeline_mode = #tpu.pipeline_mode<synchronous>, transform_indices = @transform_3, window_bounds = array<i64: 128, 128>}, {pipeline_mode = #tpu.pipeline_mode<synchronous>, transform_indices = @transform_4, window_bounds = array<i64: 1, 128>}, {pipeline_mode = #tpu.pipeline_mode<synchronous>, transform_indices = @transform_5, window_bounds = array<i64: 128, 128>}, {pipeline_mode = #tpu.pipeline_mode<synchronous>, transform_indices = @transform_6, window_bounds = array<i64: 1, 128>}, {transform_indices = @transform_7, window_bounds = array<i64: 8, 128>}]} {
    %c0 = arith.constant 0 : index
    %c0_0 = arith.constant 0 : index
    %0 = vector.load %arg1[%c0, %c0_0] : memref<8x128xbf16, #tpu.memory_space<vmem>>, vector<8x128xbf16>
    %c0_1 = arith.constant 0 : index
    %c0_2 = arith.constant 0 : index
    %1 = vector.load %arg2[%c0_1, %c0_2] : memref<128x128xbf16, #tpu.memory_space<vmem>>, vector<128x128xbf16>
    %c0_3 = arith.constant 0 : index
    %c0_4 = arith.constant 0 : index
    %2 = vector.load %arg3[%c0_3, %c0_4] : memref<1x128xf32, #tpu.memory_space<vmem>>, vector<1x128xf32>
    %cst = arith.constant dense<0.000000e+00> : vector<8x128xf32>
    %3 = tpu.matmul %0, %1, %cst {dimension_numbers = #tpu.dot_dimension_numbers<[1], [0], [0], [1], [0, 0, 1, 1], [], []>} : vector<8x128xbf16>, vector<128x128xbf16>, vector<8x128xf32> -> vector<8x128xf32>
    %4 = vector.broadcast %2 : vector<1x128xf32> to vector<8x128xf32>
    %5 = arith.addf %3, %4 : vector<8x128xf32>
    %cst_5 = arith.constant 0.000000e+00 : f32
    %6 = vector.broadcast %cst_5 : f32 to vector<8x128xf32>
    %7 = arith.maximumf %5, %6 : vector<8x128xf32>
    %8 = arith.truncf %7 : vector<8x128xf32> to vector<8x128xbf16>
    %c0_6 = arith.constant 0 : index
    %c0_7 = arith.constant 0 : index
    %9 = vector.load %arg4[%c0_6, %c0_7] : memref<128x128xbf16, #tpu.memory_space<vmem>>, vector<128x128xbf16>
    %c0_8 = arith.constant 0 : index
    %c0_9 = arith.constant 0 : index
    %10 = vector.load %arg5[%c0_8, %c0_9] : memref<1x128xf32, #tpu.memory_space<vmem>>, vector<1x128xf32>
    %cst_10 = arith.constant dense<0.000000e+00> : vector<8x128xf32>
    %11 = tpu.matmul %8, %9, %cst_10 {dimension_numbers = #tpu.dot_dimension_numbers<[1], [0], [0], [1], [0, 0, 1, 1], [], []>} : vector<8x128xbf16>, vector<128x128xbf16>, vector<8x128xf32> -> vector<8x128xf32>
    %12 = vector.broadcast %10 : vector<1x128xf32> to vector<8x128xf32>
    %13 = arith.addf %11, %12 : vector<8x128xf32>
    %cst_11 = arith.constant 0.000000e+00 : f32
    %14 = vector.broadcast %cst_11 : f32 to vector<8x128xf32>
    %15 = arith.maximumf %13, %14 : vector<8x128xf32>
    %16 = arith.truncf %15 : vector<8x128xf32> to vector<8x128xbf16>
    %c0_12 = arith.constant 0 : index
    %c0_13 = arith.constant 0 : index
    %17 = vector.load %arg6[%c0_12, %c0_13] : memref<128x128xbf16, #tpu.memory_space<vmem>>, vector<128x128xbf16>
    %c0_14 = arith.constant 0 : index
    %c0_15 = arith.constant 0 : index
    %18 = vector.load %arg7[%c0_14, %c0_15] : memref<1x128xf32, #tpu.memory_space<vmem>>, vector<1x128xf32>
    %cst_16 = arith.constant dense<0.000000e+00> : vector<8x128xf32>
    %19 = tpu.matmul %16, %17, %cst_16 {dimension_numbers = #tpu.dot_dimension_numbers<[1], [0], [0], [1], [0, 0, 1, 1], [], []>} : vector<8x128xbf16>, vector<128x128xbf16>, vector<8x128xf32> -> vector<8x128xf32>
    %20 = vector.broadcast %18 : vector<1x128xf32> to vector<8x128xf32>
    %21 = arith.addf %19, %20 : vector<8x128xf32>
    %cst_17 = arith.constant dense<0xFF800000> : vector<8xf32>
    %22 = vector.multi_reduction <maximumf>, %21, %cst_17 [1] : vector<8x128xf32> to vector<8xf32>
    %23 = vector.shape_cast %22 : vector<8xf32> to vector<8x1xf32>
    %24 = vector.broadcast %23 : vector<8x1xf32> to vector<8x128xf32>
    %25 = arith.subf %21, %24 : vector<8x128xf32>
    %26 = math.exp %25 : vector<8x128xf32>
    %cst_18 = arith.constant dense<0.000000e+00> : vector<8xf32>
    %27 = vector.multi_reduction <add>, %26, %cst_18 [1] : vector<8x128xf32> to vector<8xf32>
    %28 = vector.shape_cast %27 : vector<8xf32> to vector<8x1xf32>
    %29 = tpu.reciprocal %28 {approx = true} : vector<8x1xf32> -> vector<8x1xf32>
    %30 = vector.broadcast %29 : vector<8x1xf32> to vector<8x128xf32>
    %31 = arith.mulf %26, %30 : vector<8x128xf32>
    %c0_19 = arith.constant 0 : index
    %c0_20 = arith.constant 0 : index
    %32 = vector.load %arg8[%c0_19, %c0_20] : memref<8x128xf32, #tpu.memory_space<vmem>>, vector<8x128xf32>
    tpu.vector_store %arg8[%c0_19, %c0_20], %31 {strides = array<i32>} : memref<8x128xf32, #tpu.memory_space<vmem>>, vector<8x128xf32>,
    return
  }
  func.func @transform_0(%arg0: i32) -> (i32, i32) {
    %c0_i32 = arith.constant 0 : i32
    %c0_i32_0 = arith.constant 0 : i32
    return %arg0, %c0_i32 : i32, i32
  }
  func.func @transform_1(%arg0: i32) -> (i32, i32) {
    %c0_i32 = arith.constant 0 : i32
    %c0_i32_0 = arith.constant 0 : i32
    %c0_i32_1 = arith.constant 0 : i32
    return %c0_i32, %c0_i32_0 : i32, i32
  }
  func.func @transform_2(%arg0: i32) -> (i32, i32) {
    %c0_i32 = arith.constant 0 : i32
    %c0_i32_0 = arith.constant 0 : i32
    %c0_i32_1 = arith.constant 0 : i32
    return %c0_i32, %c0_i32_0 : i32, i32
  }
  func.func @transform_3(%arg0: i32) -> (i32, i32) {
    %c0_i32 = arith.constant 0 : i32
    %c0_i32_0 = arith.constant 0 : i32
    %c0_i32_1 = arith.constant 0 : i32
    return %c0_i32, %c0_i32_0 : i32, i32
  }
  func.func @transform_4(%arg0: i32) -> (i32, i32) {
    %c0_i32 = arith.constant 0 : i32
    %c0_i32_0 = arith.constant 0 : i32
    %c0_i32_1 = arith.constant 0 : i32
    return %c0_i32, %c0_i32_0 : i32, i32
  }
  func.func @transform_5(%arg0: i32) -> (i32, i32) {
    %c0_i32 = arith.constant 0 : i32
    %c0_i32_0 = arith.constant 0 : i32
    %c0_i32_1 = arith.constant 0 : i32
    return %c0_i32, %c0_i32_0 : i32, i32
  }
  func.func @transform_6(%arg0: i32) -> (i32, i32) {
    %c0_i32 = arith.constant 0 : i32
    %c0_i32_0 = arith.constant 0 : i32
    %c0_i32_1 = arith.constant 0 : i32
    return %c0_i32, %c0_i32_0 : i32, i32
  }
  func.func @transform_7(%arg0: i32) -> (i32, i32) {
    %c0_i32 = arith.constant 0 : i32
    %c0_i32_0 = arith.constant 0 : i32
    return %arg0, %c0_i32 : i32, i32
  }
}

</mosaic_0001>

<llo_original>
// kernel: tpu_custom_call.1
$region0: #{tpu_custom_call.1}
  #allocation0 [shape = 'u32[]', space=smem, size = 0x4, offset = 0x4, fixed_abs, tag = 'smem constant byte address 0x4 - core index']
  #allocation1 [shape = 'u32[72,128]{1,0:T(1,128)}', space=vmem, size = 0x9000, scoped, tag = 'internal scratch']
  %s0 = inlined_call_operand.hbm [shape: bf16[8,128], index: 0, kind: input, shape index: {}]
  %s1 = inlined_call_operand.hbm [shape: bf16[128,128], index: 1, kind: input, shape index: {}]
  %s2 = inlined_call_operand.vmem [shape: f32[1,128], index: 2, kind: input, shape index: {}]
  %s3 = inlined_call_operand.hbm [shape: bf16[128,128], index: 3, kind: input, shape index: {}]
  %s4 = inlined_call_operand.vmem [shape: f32[1,128], index: 4, kind: input, shape index: {}]
  %s5 = inlined_call_operand.hbm [shape: bf16[128,128], index: 5, kind: input, shape index: {}]
  %s6 = inlined_call_operand.vmem [shape: f32[1,128], index: 6, kind: input, shape index: {}]
  %s7 = inlined_call_operand.hbm [shape: f32[8,128], index: 7, kind: output, shape index: {}]
  %s8 = sld [smem:[#allocation0]]
  $region54: #{tpu_custom_call.1} parent=0
    _
  %s10 = ssub.s32 1, %s8
  %s11 = scalar_select 0, %s10, %s8
  $region1: #{tpu_custom_call.1} parent=0
    #allocation2 [shape = 'u8[2048]{0}', space=vmem, size = 0x800, scoped, tag = 'input window, operand 0, single buffered']
    #allocation3 [shape = 's32[1]{0}', space=sflag, size = 0x4, scoped, tag = 'scoped memory for tpu_custom_call.1']
    #allocation4 [shape = 's32[1]{0}', space=sflag, size = 0x4, scoped, tag = 'scoped memory for tpu_custom_call.1']
    #allocation5 [shape = 'u8[32768]{0}', space=vmem, size = 0x8000, scoped, tag = 'input window, operand 1, single buffered']
    #allocation6 [shape = 's32[1]{0}', space=sflag, size = 0x4, scoped, tag = 'scoped memory for tpu_custom_call.1']
    #allocation7 [shape = 'u8[32768]{0}', space=vmem, size = 0x8000, scoped, tag = 'input window, operand 3, single buffered']
    #allocation8 [shape = 'u8[32768]{0}', space=vmem, size = 0x8000, scoped, tag = 'input window, operand 5, single buffered']
    #allocation9 [shape = 's32[1]{0}', space=sflag, size = 0x4, scoped, tag = 'scoped memory for tpu_custom_call.1']
    #allocation10 [shape = 'u8[4096]{0}', space=vmem, size = 0x1000, scoped, tag = 'output window, operand 0, single buffered']
    %12 = vsyncpa [#allocation3], 0
    %13 = vsyncpa [#allocation6], 0
    %14 = vsyncpa [#allocation9], 0
    %15 = vsyncpa [#allocation4], 0
    // Predicated region
    $region2: #{tpu_custom_call.1} parent=1 // pred_check
      _
    $region3: #{tpu_custom_call.1} parent=1 // pred_check_branch
      %17 = sbr.rel (0) target = $region5
    $region4: #{tpu_custom_call.1} parent=1 // pred_region
      %19 = vsyncadd [#allocation3], 0
      %s21 = sshll.u32 %s0, 4
      %s22 = int_to_ptr.hbm [resolvable:$true] %s21
      %s23 = sshll.u32 [#allocation2], 4
      %s24 = int_to_ptr.vmem [resolvable:$true] %s23
      %26 = dma.hbm_to_vmem [thread:$0]  %s22, 64, %s24, [#allocation3]
    $region5: #{tpu_custom_call.1} parent=1 // pred_fallthru
      _
    // Predicated region
    $region6: #{tpu_custom_call.1} parent=1 // pred_check
      _
    $region7: #{tpu_custom_call.1} parent=1 // pred_check_branch
      %28 = sbr.rel (0) target = $region9
    $region8: #{tpu_custom_call.1} parent=1 // pred_region
      %30 = vsyncadd [#allocation6], 0
      %s31 = sshll.u32 %s1, 4
      %s32 = int_to_ptr.hbm [resolvable:$true] %s31
      %s33 = sshll.u32 [#allocation5], 4
      %s34 = int_to_ptr.vmem [resolvable:$true] %s33
      %39 = dma.hbm_to_vmem [thread:$0]  %s32, 1024, %s34, [#allocation6], 64, 64, 4
    $region9: #{tpu_custom_call.1} parent=1 // pred_fallthru
      _
    // Predicated region
    $region10: #{tpu_custom_call.1} parent=1 // pred_check
      _
    $region11: #{tpu_custom_call.1} parent=1 // pred_check_branch
      %41 = sbr.rel (0) target = $region13
    $region12: #{tpu_custom_call.1} parent=1 // pred_region
      _
    $region13: #{tpu_custom_call.1} parent=1 // pred_fallthru
      _
    // Predicated region
    $region14: #{tpu_custom_call.1} parent=1 // pred_check
      _
    $region15: #{tpu_custom_call.1} parent=1 // pred_check_branch
      %43 = sbr.rel (0) target = $region17
    $region16: #{tpu_custom_call.1} parent=1 // pred_region
      %45 = vsyncadd [#allocation6], 0
      %s46 = sshll.u32 %s3, 4
      %s47 = int_to_ptr.hbm [resolvable:$true] %s46
      %s48 = sshll.u32 [#allocation7], 4
      %s49 = int_to_ptr.vmem [resolvable:$true] %s48
      %54 = dma.hbm_to_vmem [thread:$0]  %s47, 1024, %s49, [#allocation6], 64, 64, 4
    $region17: #{tpu_custom_call.1} parent=1 // pred_fallthru
      _
    // Predicated region
    $region18: #{tpu_custom_call.1} parent=1 // pred_check
      _
    $region19: #{tpu_custom_call.1} parent=1 // pred_check_branch
      %56 = sbr.rel (0) target = $region21
    $region20: #{tpu_custom_call.1} parent=1 // pred_region
      _
    $region21: #{tpu_custom_call.1} parent=1 // pred_fallthru
      _
    // Predicated region
    $region22: #{tpu_custom_call.1} parent=1 // pred_check
      _
    $region23: #{tpu_custom_call.1} parent=1 // pred_check_branch
      %58 = sbr.rel (0) target = $region25
    $region24: #{tpu_custom_call.1} parent=1 // pred_region
      %60 = vsyncadd [#allocation9], 0
      %s61 = sshll.u32 %s5, 4
      %s62 = int_to_ptr.hbm [resolvable:$true] %s61
      %s63 = sshll.u32 [#allocation8], 4
      %s64 = int_to_ptr.vmem [resolvable:$true] %s63
      %69 = dma.hbm_to_vmem [thread:$0]  %s62, 1024, %s64, [#allocation9], 64, 64, 4
    $region25: #{tpu_custom_call.1} parent=1 // pred_fallthru
      _
    // Predicated region
    $region26: #{tpu_custom_call.1} parent=1 // pred_check
      _
    $region27: #{tpu_custom_call.1} parent=1 // pred_check_branch
      %71 = sbr.rel (0) target = $region29
    $region28: #{tpu_custom_call.1} parent=1 // pred_region
      _
    $region29: #{tpu_custom_call.1} parent=1 // pred_fallthru
      _
    // Predicated region
    $region30: #{tpu_custom_call.1} parent=1 // pred_check
      _
    $region31: #{tpu_custom_call.1} parent=1 // pred_check_branch
      %73 = sbr.rel (0) target = $region33
    $region32: #{tpu_custom_call.1} parent=1 // pred_region
      %75 = dma.done [#allocation3], 64
    $region33: #{tpu_custom_call.1} parent=1 // pred_fallthru
      _
    // Predicated region
    $region34: #{tpu_custom_call.1} parent=1 // pred_check
      _
    $region35: #{tpu_custom_call.1} parent=1 // pred_check_branch
      %77 = sbr.rel (0) target = $region37
    $region36: #{tpu_custom_call.1} parent=1 // pred_region
      %79 = dma.done [#allocation6], 1024
    $region37: #{tpu_custom_call.1} parent=1 // pred_fallthru
      _
    // Predicated region
    $region38: #{tpu_custom_call.1} parent=1 // pred_check
      _
    $region39: #{tpu_custom_call.1} parent=1 // pred_check_branch
      %81 = sbr.rel (0) target = $region41
    $region40: #{tpu_custom_call.1} parent=1 // pred_region
      %83 = dma.done [#allocation6], 1024
    $region41: #{tpu_custom_call.1} parent=1 // pred_fallthru
      _
    // Predicated region
    $region42: #{tpu_custom_call.1} parent=1 // pred_check
      _
    $region43: #{tpu_custom_call.1} parent=1 // pred_check_branch
      %85 = sbr.rel (0) target = $region45
    $region44: #{tpu_custom_call.1} parent=1 // pred_region
      %87 = dma.done [#allocation9], 1024
    $region45: #{tpu_custom_call.1} parent=1 // pred_fallthru
      _
    %v88 = vld [vmem:[#allocation2] sm:$0xf]
    %v89 = vld [vmem:[#allocation5] sm:$0xf]
    %v90 = vld [vmem:[#allocation5 + $0x4] sm:$0xf]
    %v91 = vld [vmem:[#allocation5 + $0x8] sm:$0xf]
    %v92 = vld [vmem:[#allocation5 + $0xc] sm:$0xf]
    %v93 = vld [vmem:[#allocation5 + $0x10] sm:$0xf]
    %v94 = vld [vmem:[#allocation5 + $0x14] sm:$0xf]
    %v95 = vld [vmem:[#allocation5 + $0x18] sm:$0xf]
    %v96 = vld [vmem:[#allocation5 + $0x1c] sm:$0xf]
    %v97 = vld [vmem:[#allocation5 + $0x20] sm:$0xf]
    %v98 = vld [vmem:[#allocation5 + $0x24] sm:$0xf]
    %v99 = vld [vmem:[#allocation5 + $0x28] sm:$0xf]
    %v100 = vld [vmem:[#allocation5 + $0x2c] sm:$0xf]
    %v101 = vld [vmem:[#allocation5 + $0x30] sm:$0xf]
    %v102 = vld [vmem:[#allocation5 + $0x34] sm:$0xf]
    %v103 = vld [vmem:[#allocation5 + $0x38] sm:$0xf]
    %v104 = vld [vmem:[#allocation5 + $0x3c] sm:$0xf]
    %v105 = vld [vmem:[%s2] sm:$0x1]
    %v107 = vperm.slane %v105, 0
    %v125 = vunpack.c.l.b16 %v89
    %v126 = vunpack.c.l.b16 %v90
    %v127 = vunpack.c.l.b16 %v91
    %v128 = vunpack.c.l.b16 %v92
    %v129 = vunpack.c.l.b16 %v93
    %v130 = vunpack.c.l.b16 %v94
    %v131 = vunpack.c.l.b16 %v95
    %v132 = vunpack.c.l.b16 %v96
    %v133 = vunpack.c.l.b16 %v97
    %v134 = vunpack.c.l.b16 %v98
    %v135 = vunpack.c.l.b16 %v99
    %v136 = vunpack.c.l.b16 %v100
    %v137 = vunpack.c.l.b16 %v101
    %v138 = vunpack.c.l.b16 %v102
    %v139 = vunpack.c.l.b16 %v103
    %v140 = vunpack.c.l.b16 %v104
    %v141 = vpack.c.b16 %v126, %v125
    %v142 = vpack.c.b16 %v128, %v127
    %v143 = vpack.c.b16 %v130, %v129
    %v144 = vpack.c.b16 %v132, %v131
    %v145 = vpack.c.b16 %v134, %v133
    %v146 = vpack.c.b16 %v136, %v135
    %v147 = vpack.c.b16 %v138, %v137
    %v148 = vpack.c.b16 %v140, %v139
    %157 = vmatpush.bf16.msra.mxu0 %v148
    %158 = vmatpush.bf16.msra.mxu0 %v147
    %159 = vmatpush.bf16.msra.mxu0 %v146
    %160 = vmatpush.bf16.msra.mxu0 %v145
    %161 = vmatpush.bf16.msra.mxu0 %v144
    %162 = vmatpush.bf16.msra.mxu0 %v143
    %163 = vmatpush.bf16.msra.mxu0 %v142
    %164 = vmatpush.bf16.msra.mxu0 %v141
    %165 = vmatmul.bf16.gmra.mxu0 %v88
    %v166 = vpop.f32.mrf.mxu0
    %v167 = vadd.f32 %v107, %v166
    %v168 = vpop.f32.mrf.mxu0
    %169 = vdwg.mxu0
    %v170 = vmax.f32 %v167, 0.0
    %v171 = vpack.c.bf16 %v170, %v170
    %v172 = vld [vmem:[#allocation7] sm:$0xf]
    %v173 = vld [vmem:[#allocation7 + $0x4] sm:$0xf]
    %v174 = vld [vmem:[#allocation7 + $0x8] sm:$0xf]
    %v175 = vld [vmem:[#allocation7 + $0xc] sm:$0xf]
    %v176 = vld [vmem:[#allocation7 + $0x10] sm:$0xf]
    %v177 = vld [vmem:[#allocation7 + $0x14] sm:$0xf]
    %v178 = vld [vmem:[#allocation7 + $0x18] sm:$0xf]
    %v179 = vld [vmem:[#allocation7 + $0x1c] sm:$0xf]
    %v180 = vld [vmem:[#allocation7 + $0x20] sm:$0xf]
    %v181 = vld [vmem:[#allocation7 + $0x24] sm:$0xf]
    %v182 = vld [vmem:[#allocation7 + $0x28] sm:$0xf]
    %v183 = vld [vmem:[#allocation7 + $0x2c] sm:$0xf]
    %v184 = vld [vmem:[#allocation7 + $0x30] sm:$0xf]
    %v185 = vld [vmem:[#allocation7 + $0x34] sm:$0xf]
    %v186 = vld [vmem:[#allocation7 + $0x38] sm:$0xf]
    %v187 = vld [vmem:[#allocation7 + $0x3c] sm:$0xf]
    %v188 = vld [vmem:[%s4] sm:$0x1]
    %v190 = vperm.slane %v188, 0
    %v208 = vunpack.c.l.b16 %v172
    %v209 = vunpack.c.l.b16 %v173
    %v210 = vunpack.c.l.b16 %v174
    %v211 = vunpack.c.l.b16 %v175
    %v212 = vunpack.c.l.b16 %v176
    %v213 = vunpack.c.l.b16 %v177
    %v214 = vunpack.c.l.b16 %v178
    %v215 = vunpack.c.l.b16 %v179
    %v216 = vunpack.c.l.b16 %v180
    %v217 = vunpack.c.l.b16 %v181
    %v218 = vunpack.c.l.b16 %v182
    %v219 = vunpack.c.l.b16 %v183
    %v220 = vunpack.c.l.b16 %v184
    %v221 = vunpack.c.l.b16 %v185
    %v222 = vunpack.c.l.b16 %v186
    %v223 = vunpack.c.l.b16 %v187
    %v224 = vpack.c.b16 %v209, %v208
    %v225 = vpack.c.b16 %v211, %v210
    %v226 = vpack.c.b16 %v213, %v212
    %v227 = vpack.c.b16 %v215, %v214
    %v228 = vpack.c.b16 %v217, %v216
    %v229 = vpack.c.b16 %v219, %v218
    %v230 = vpack.c.b16 %v221, %v220
    %v231 = vpack.c.b16 %v223, %v222
    %240 = vmatpush.bf16.msra.mxu0 %v231
    %241 = vmatpush.bf16.msra.mxu0 %v230
    %242 = vmatpush.bf16.msra.mxu0 %v229
    %243 = vmatpush.bf16.msra.mxu0 %v228
    %244 = vmatpush.bf16.msra.mxu0 %v227
    %245 = vmatpush.bf16.msra.mxu0 %v226
    %246 = vmatpush.bf16.msra.mxu0 %v225
    %247 = vmatpush.bf16.msra.mxu0 %v224
    %248 = vmatmul.bf16.gmra.mxu0 %v171
    %v249 = vpop.f32.mrf.mxu0
    %v250 = vadd.f32 %v190, %v249
    %v251 = vpop.f32.mrf.mxu0
    %252 = vdwg.mxu0
    %v253 = vmax.f32 %v250, 0.0
    %v254 = vpack.c.bf16 %v253, %v253
    %v255 = vld [vmem:[#allocation8] sm:$0xf]
    %v256 = vld [vmem:[#allocation8 + $0x4] sm:$0xf]
    %v257 = vld [vmem:[#allocation8 + $0x8] sm:$0xf]
    %v258 = vld [vmem:[#allocation8 + $0xc] sm:$0xf]
    %v259 = vld [vmem:[#allocation8 + $0x10] sm:$0xf]
    %v260 = vld [vmem:[#allocation8 + $0x14] sm:$0xf]
    %v261 = vld [vmem:[#allocation8 + $0x18] sm:$0xf]
    %v262 = vld [vmem:[#allocation8 + $0x1c] sm:$0xf]
    %v263 = vld [vmem:[#allocation8 + $0x20] sm:$0xf]
    %v264 = vld [vmem:[#allocation8 + $0x24] sm:$0xf]
    %v265 = vld [vmem:[#allocation8 + $0x28] sm:$0xf]
    %v266 = vld [vmem:[#allocation8 + $0x2c] sm:$0xf]
    %v267 = vld [vmem:[#allocation8 + $0x30] sm:$0xf]
    %v268 = vld [vmem:[#allocation8 + $0x34] sm:$0xf]
    %v269 = vld [vmem:[#allocation8 + $0x38] sm:$0xf]
    %v270 = vld [vmem:[#allocation8 + $0x3c] sm:$0xf]
    %v271 = vld [vmem:[%s6] sm:$0x1]
    %v273 = vperm.slane %v271, 0
    %v291 = vunpack.c.l.b16 %v255
    %v292 = vunpack.c.l.b16 %v256
    %v293 = vunpack.c.l.b16 %v257
    %v294 = vunpack.c.l.b16 %v258
    %v295 = vunpack.c.l.b16 %v259
    %v296 = vunpack.c.l.b16 %v260
    %v297 = vunpack.c.l.b16 %v261
    %v298 = vunpack.c.l.b16 %v262
    %v299 = vunpack.c.l.b16 %v263
    %v300 = vunpack.c.l.b16 %v264
    %v301 = vunpack.c.l.b16 %v265
    %v302 = vunpack.c.l.b16 %v266
    %v303 = vunpack.c.l.b16 %v267
    %v304 = vunpack.c.l.b16 %v268
    %v305 = vunpack.c.l.b16 %v269
    %v306 = vunpack.c.l.b16 %v270
    %v307 = vpack.c.b16 %v292, %v291
    %v308 = vpack.c.b16 %v294, %v293
    %v309 = vpack.c.b16 %v296, %v295
    %v310 = vpack.c.b16 %v298, %v297
    %v311 = vpack.c.b16 %v300, %v299
    %v312 = vpack.c.b16 %v302, %v301
    %v313 = vpack.c.b16 %v304, %v303
    %v314 = vpack.c.b16 %v306, %v305
    %323 = vmatpush.bf16.msra.mxu0 %v314
    %324 = vmatpush.bf16.msra.mxu0 %v313
    %325 = vmatpush.bf16.msra.mxu0 %v312
    %326 = vmatpush.bf16.msra.mxu0 %v311
    %327 = vmatpush.bf16.msra.mxu0 %v310
    %328 = vmatpush.bf16.msra.mxu0 %v309
    %329 = vmatpush.bf16.msra.mxu0 %v308
    %330 = vmatpush.bf16.msra.mxu0 %v307
    %331 = vmatmul.bf16.gmra.mxu0 %v254
    %v332 = vpop.f32.mrf.mxu0
    %v333 = vadd.f32 %v273, %v332
    %v334 = vpop.f32.mrf.mxu0
    %335 = vdwg.mxu0
    %336 = vmax.xlane.f32.xlu0 %v333
    %v337 = vpop.xlane.xlu0 %336
    %v338 = vsub.f32 %v333, %v337
    %v339 = vmul.f32 %v338, 1.442695
    %v340 = vpow.pop %v339
    %341 = vadd.xlane.f32.xlu0 %v340
    %v342 = vpop.xlane.xlu0 %341
    %v343 = vrcp.pop %v342
    %v344 = vmul.f32 %v340, %v343
    %345 = vst [vmem:[#allocation10] sm:$0xff] %v344
    // Predicated region
    $region46: #{tpu_custom_call.1} parent=1 // pred_check
      _
    $region47: #{tpu_custom_call.1} parent=1 // pred_check_branch
      %347 = sbr.rel (0) target = $region49
    $region48: #{tpu_custom_call.1} parent=1 // pred_region
      %349 = vsyncadd [#allocation4], 0
      %s351 = sshll.u32 [#allocation10], 4
      %s352 = int_to_ptr.vmem [resolvable:$true] %s351
      %s353 = sshll.u32 %s7, 4
      %s354 = int_to_ptr.hbm [resolvable:$true] %s353
      %356 = dma.vmem_to_hbm [thread:$0]  %s352, 128, %s354, [#allocation4]
    $region49: #{tpu_custom_call.1} parent=1 // pred_fallthru
      _
    // Predicated region
    $region50: #{tpu_custom_call.1} parent=1 // pred_check
      _
    $region51: #{tpu_custom_call.1} parent=1 // pred_check_branch
      %358 = sbr.rel (0) target = $region53
    $region52: #{tpu_custom_call.1} parent=1 // pred_region
      %360 = dma.done [#allocation4], 128
    $region53: #{tpu_custom_call.1} parent=1 // pred_fallthru
      _
    %361 = vsyncpa [#allocation3], 1
    %362 = vsyncpa [#allocation6], 1
    %363 = vsyncpa [#allocation9], 1
    %364 = vsyncpa [#allocation4], 1

</llo_original>
